<compile_context>
chip_gen: v5e
topology: v5e:2x2
jax: 0.10.0
libtpu: 0.0.40
codegen_flags: <defaults>
</compile_context>

<pallas_src>
import functools

import jax
import jax.numpy as jnp
import numpy as np
from jax.experimental import pallas as pl
from jax.experimental.pallas import tpu as pltpu


# --------------------------------------------------------------------------
# Kernel
# --------------------------------------------------------------------------
def _pose3d_kernel(x_ref, we_ref, wa_ref, wb_ref, ws_ref, b_ref, o_ref):
    """One (batch, time-chunk) tile per grid step.

    x_ref : (1, Cin, Tt)   activations, NCT layout (time on lanes)
    we_ref: (C, Cin)       BN-folded expand weight
    wa_ref: (C, C)         BN-folded conv_a weight
    wb_ref: (C, C)         BN-folded conv_b weight
    ws_ref: (Cout, C)      shrink weight
    b_ref : (Cb, 4)        packed biases: cols [b_e, b_a, b_b, b_s(padded)]
    o_ref : (1, Cout, Tt)
    """
    C = we_ref.shape[0]
    Cout = ws_ref.shape[0]

    # Packed biases, sliced statically; (C, 1) broadcasts over the T lanes.
    b_e = b_ref[:C, 0:1]
    b_a = b_ref[:C, 1:2]
    b_b = b_ref[:C, 2:3]
    b_s = b_ref[:Cout, 3:4]

    x = x_ref[0]                                            # (Cin, Tt)

    # expand: 1x1 conv (BN scale already folded into weight) + bias + ReLU
    h = jnp.dot(we_ref[...], x, preferred_element_type=jnp.float32)
    h = jnp.maximum(h + b_e, 0.0)                           # (C, Tt) f32

    res = h

    # residual block: two (1x1 conv + folded-BN bias + ReLU)
    h = jnp.dot(wa_ref[...], h.astype(wa_ref.dtype),
                preferred_element_type=jnp.float32)
    h = jnp.maximum(h + b_a, 0.0)

    h = jnp.dot(wb_ref[...], h.astype(wb_ref.dtype),
                preferred_element_type=jnp.float32)
    h = jnp.maximum(h + b_b, 0.0)

    h = res + h

    # shrink: 1x1 conv with bias (no activation)
    y = jnp.dot(ws_ref[...], h.astype(ws_ref.dtype),
                preferred_element_type=jnp.float32) + b_s
    o_ref[0] = y.astype(o_ref.dtype)                        # (Cout, Tt)


# --------------------------------------------------------------------------
# Wrapper
# --------------------------------------------------------------------------
def _fold_bn_into_weight(w, gamma, beta, mean, var, eps=1e-5):
    """Conv1d(k=1) weight (Cout, Cin, 1) + eval-BN -> folded weight & bias."""
    scale = gamma / jnp.sqrt(var + eps)                     # (Cout,)
    w_f = w[:, :, 0] * scale[:, None]                       # (Cout, Cin)
    b_f = beta - mean * scale                               # (Cout,)
    return w_f.astype(jnp.float32), b_f.astype(jnp.float32)


def _pick_t_tile(T, target=1024):
    """Largest multiple-of-128 divisor of T that is <= target, else full T."""
    if T <= target or T % 128 != 0:
        return T
    best = 128
    t = 128
    while t <= target:
        if T % t == 0:
            best = t
        t += 128
    return best


@functools.partial(jax.jit, static_argnames=("compute_dtype",))
def pose3d_branch(x, params, *, compute_dtype=jnp.float32):
    """x: (B, Cin, T) float32 -> (B, Cout, T) float32 (PyTorch NCT layout)."""
    B, Cin, T = x.shape

    w_e, b_e = _fold_bn_into_weight(params["w_expand"], *params["bn_expand"])
    w_a, b_a = _fold_bn_into_weight(params["w_a"], *params["bn_a"])
    w_b, b_b = _fold_bn_into_weight(params["w_b"], *params["bn_b"])
    w_s = params["w_shrink"][:, :, 0].astype(jnp.float32)   # (Cout, C)
    b_s = params["b_shrink"].astype(jnp.float32)            # (Cout,)

    C = w_e.shape[0]
    Cout = w_s.shape[0]
    Cb = max(C, Cout)

    # Pack all biases into a single small array -> one BlockSpec / DMA.
    bias = jnp.zeros((Cb, 4), jnp.float32)
    bias = bias.at[:C, 0].set(b_e).at[:C, 1].set(b_a).at[:C, 2].set(b_b)
    bias = bias.at[:Cout, 3].set(b_s)

    # Optional bf16 matmul path for v6e/v7x MXU (f32 accumulation in-kernel).
    x_k = x.astype(compute_dtype)
    w_e = w_e.astype(compute_dtype)
    w_a = w_a.astype(compute_dtype)
    w_b = w_b.astype(compute_dtype)
    w_s = w_s.astype(compute_dtype)

    Tt = _pick_t_tile(T)
    nT = T // Tt

    const = lambda shape: pl.BlockSpec(shape, lambda b, t: (0,) * len(shape))

    out = pl.pallas_call(
        _pose3d_kernel,
        out_shape=jax.ShapeDtypeStruct((B, Cout, T), jnp.float32),
        grid_spec=pltpu.PrefetchScalarGridSpec(
            num_scalar_prefetch=0,
            grid=(B, nT),
            in_specs=[
                pl.BlockSpec((1, Cin, Tt), lambda b, t: (b, 0, t)),
                const((C, Cin)),
                const((C, C)),
                const((C, C)),
                const((Cout, C)),
                const((Cb, 4)),
            ],
            out_specs=pl.BlockSpec((1, Cout, Tt), lambda b, t: (b, 0, t)),
        ),
        compiler_params=pltpu.CompilerParams(
            dimension_semantics=("parallel", "parallel")),
    )(x_k, w_e, w_a, w_b, w_s, bias)

    return out


# --------------------------------------------------------------------------
# Pure-JAX reference (eval-mode PyTorch semantics) for the correctness check.
# --------------------------------------------------------------------------
def _reference(x, params):
    def conv1x1(h, w):                                      # w: (Cout, Cin, 1)
        return jnp.einsum("oc,bct->bot", w[:, :, 0], h)

    def bn(h, p, eps=1e-5):
        g, b, m, v = p
        return (h - m[None, :, None]) / jnp.sqrt(v[None, :, None] + eps) \
            * g[None, :, None] + b[None, :, None]

    h = jax.nn.relu(bn(conv1x1(x, params["w_expand"]), params["bn_expand"]))
    res = h
    h = jax.nn.relu(bn(conv1x1(h, params["w_a"]), params["bn_a"]))
    h = jax.nn.relu(bn(conv1x1(h, params["w_b"]), params["bn_b"]))
    h = res + h
    return conv1x1(h, params["w_shrink"]) + params["b_shrink"][None, :, None]


def make_params(key, in_channel, channel, out_channel):
    ks = jax.random.split(key, 8)

    def bn_params(k, c):
        k1, k2, k3, k4 = jax.random.split(k, 4)
        gamma = 1.0 + 0.1 * jax.random.normal(k1, (c,), jnp.float32)
        beta = 0.1 * jax.random.normal(k2, (c,), jnp.float32)
        mean = 0.1 * jax.random.normal(k3, (c,), jnp.float32)
        var = 0.5 + jnp.abs(jax.random.normal(k4, (c,), jnp.float32))
        return (gamma, beta, mean, var)

    return {
        "w_expand": 0.2 * jax.random.normal(ks[0], (channel, in_channel, 1), jnp.float32),
        "bn_expand": bn_params(ks[1], channel),
        "w_a": 0.2 * jax.random.normal(ks[2], (channel, channel, 1), jnp.float32),
        "bn_a": bn_params(ks[3], channel),
        "w_b": 0.2 * jax.random.normal(ks[4], (channel, channel, 1), jnp.float32),
        "bn_b": bn_params(ks[5], channel),
        "w_shrink": 0.2 * jax.random.normal(ks[6], (out_channel, channel, 1), jnp.float32),
        "b_shrink": 0.1 * jax.random.normal(ks[7], (out_channel,), jnp.float32),
    }


if __name__ == "__main__":
    B, in_channel, channel, oup_channel, T = 2, 8, 32, 3, 16

    key = jax.random.PRNGKey(0)
    kx, kp = jax.random.split(key)
    x = jax.random.normal(kx, (B, in_channel, T), jnp.float32)
    params = make_params(kp, in_channel, channel, oup_channel)

    out = jax.block_until_ready(pose3d_branch(x, params))
    ref = jax.block_until_ready(_reference(x, params))

    assert out.shape == (B, oup_channel, T), out.shape
    np.testing.assert_allclose(np.asarray(out), np.asarray(ref),
                               rtol=1e-4, atol=1e-5)
    print("KERNEL_OK")
</pallas_src>

<mosaic_0001>
module attributes {stable_mosaic.version = 11 : i64} {
  func.func @_pose3d_kernel(%arg0: i32, %arg1: i32, %arg2: memref<1x8x16xf32, #tpu.memory_space<vmem>>, %arg3: memref<32x8xf32, #tpu.memory_space<vmem>>, %arg4: memref<32x32xf32, #tpu.memory_space<vmem>>, %arg5: memref<32x32xf32, #tpu.memory_space<vmem>>, %arg6: memref<3x32xf32, #tpu.memory_space<vmem>>, %arg7: memref<32x4xf32, #tpu.memory_space<vmem>>, %arg8: memref<1x3x16xf32, #tpu.memory_space<vmem>>) attributes {dimension_semantics = [#tpu.dimension_semantics<parallel>, #tpu.dimension_semantics<parallel>], iteration_bounds = array<i64: 2, 1>, scalar_prefetch = 0 : i64, scratch_operands = 0 : i64, tpu.core_type = #tpu.core_type<tc>, window_params = [{transform_indices = @transform_0, window_bounds = array<i64: 1, 8, 16>}, {pipeline_mode = #tpu.pipeline_mode<synchronous>, transform_indices = @transform_1, window_bounds = array<i64: 32, 8>}, {pipeline_mode = #tpu.pipeline_mode<synchronous>, transform_indices = @transform_2, window_bounds = array<i64: 32, 32>}, {pipeline_mode = #tpu.pipeline_mode<synchronous>, transform_indices = @transform_3, window_bounds = array<i64: 32, 32>}, {pipeline_mode = #tpu.pipeline_mode<synchronous>, transform_indices = @transform_4, window_bounds = array<i64: 3, 32>}, {pipeline_mode = #tpu.pipeline_mode<synchronous>, transform_indices = @transform_5, window_bounds = array<i64: 32, 4>}, {transform_indices = @transform_6, window_bounds = array<i64: 1, 3, 16>}]} {
    %c0 = arith.constant 0 : index
    %c0_0 = arith.constant 0 : index
    %0 = vector.load %arg7[%c0, %c0_0] : memref<32x4xf32, #tpu.memory_space<vmem>>, vector<32x1xf32>
    %c0_1 = arith.constant 0 : index
    %c1 = arith.constant 1 : index
    %1 = vector.load %arg7[%c0_1, %c1] : memref<32x4xf32, #tpu.memory_space<vmem>>, vector<32x1xf32>
    %c0_2 = arith.constant 0 : index
    %c2 = arith.constant 2 : index
    %2 = vector.load %arg7[%c0_2, %c2] : memref<32x4xf32, #tpu.memory_space<vmem>>, vector<32x1xf32>
    %c0_3 = arith.constant 0 : index
    %c3 = arith.constant 3 : index
    %3 = vector.load %arg7[%c0_3, %c3] : memref<32x4xf32, #tpu.memory_space<vmem>>, vector<3x1xf32>
    %c0_4 = arith.constant 0 : index
    %c0_5 = arith.constant 0 : index
    %c0_6 = arith.constant 0 : index
    %4 = vector.load %arg2[%c0_4, %c0_5, %c0_6] : memref<1x8x16xf32, #tpu.memory_space<vmem>>, vector<1x8x16xf32>
    %5 = vector.shape_cast %4 : vector<1x8x16xf32> to vector<8x16xf32>
    %c0_7 = arith.constant 0 : index
    %c0_8 = arith.constant 0 : index
    %6 = vector.load %arg3[%c0_7, %c0_8] : memref<32x8xf32, #tpu.memory_space<vmem>>, vector<32x8xf32>
    %cst = arith.constant dense<0.000000e+00> : vector<32x16xf32>
    %7 = tpu.matmul %6, %5, %cst {dimension_numbers = #tpu.dot_dimension_numbers<[1], [0], [0], [1], [0, 0, 1, 1], [], []>} : vector<32x8xf32>, vector<8x16xf32>, vector<32x16xf32> -> vector<32x16xf32>
    %8 = vector.broadcast %0 : vector<32x1xf32> to vector<32x16xf32>
    %9 = arith.addf %7, %8 : vector<32x16xf32>
    %cst_9 = arith.constant 0.000000e+00 : f32
    %10 = vector.broadcast %cst_9 : f32 to vector<32x16xf32>
    %11 = arith.maximumf %9, %10 : vector<32x16xf32>
    %c0_10 = arith.constant 0 : index
    %c0_11 = arith.constant 0 : index
    %12 = vector.load %arg4[%c0_10, %c0_11] : memref<32x32xf32, #tpu.memory_space<vmem>>, vector<32x32xf32>
    %cst_12 = arith.constant dense<0.000000e+00> : vector<32x16xf32>
    %13 = tpu.matmul %12, %11, %cst_12 {dimension_numbers = #tpu.dot_dimension_numbers<[1], [0], [0], [1], [0, 0, 1, 1], [], []>} : vector<32x32xf32>, vector<32x16xf32>, vector<32x16xf32> -> vector<32x16xf32>
    %14 = vector.broadcast %1 : vector<32x1xf32> to vector<32x16xf32>
    %15 = arith.addf %13, %14 : vector<32x16xf32>
    %cst_13 = arith.constant 0.000000e+00 : f32
    %16 = vector.broadcast %cst_13 : f32 to vector<32x16xf32>
    %17 = arith.maximumf %15, %16 : vector<32x16xf32>
    %c0_14 = arith.constant 0 : index
    %c0_15 = arith.constant 0 : index
    %18 = vector.load %arg5[%c0_14, %c0_15] : memref<32x32xf32, #tpu.memory_space<vmem>>, vector<32x32xf32>
    %cst_16 = arith.constant dense<0.000000e+00> : vector<32x16xf32>
    %19 = tpu.matmul %18, %17, %cst_16 {dimension_numbers = #tpu.dot_dimension_numbers<[1], [0], [0], [1], [0, 0, 1, 1], [], []>} : vector<32x32xf32>, vector<32x16xf32>, vector<32x16xf32> -> vector<32x16xf32>
    %20 = vector.broadcast %2 : vector<32x1xf32> to vector<32x16xf32>
    %21 = arith.addf %19, %20 : vector<32x16xf32>
    %cst_17 = arith.constant 0.000000e+00 : f32
    %22 = vector.broadcast %cst_17 : f32 to vector<32x16xf32>
    %23 = arith.maximumf %21, %22 : vector<32x16xf32>
    %24 = arith.addf %11, %23 : vector<32x16xf32>
    %c0_18 = arith.constant 0 : index
    %c0_19 = arith.constant 0 : index
    %25 = vector.load %arg6[%c0_18, %c0_19] : memref<3x32xf32, #tpu.memory_space<vmem>>, vector<3x32xf32>
    %cst_20 = arith.constant dense<0.000000e+00> : vector<3x16xf32>
    %26 = tpu.matmul %25, %24, %cst_20 {dimension_numbers = #tpu.dot_dimension_numbers<[1], [0], [0], [1], [0, 0, 1, 1], [], []>} : vector<3x32xf32>, vector<32x16xf32>, vector<3x16xf32> -> vector<3x16xf32>
    %27 = vector.broadcast %3 : vector<3x1xf32> to vector<3x16xf32>
    %28 = arith.addf %26, %27 : vector<3x16xf32>
    %c0_21 = arith.constant 0 : index
    %c0_22 = arith.constant 0 : index
    %c0_23 = arith.constant 0 : index
    %29 = vector.load %arg8[%c0_21, %c0_22, %c0_23] : memref<1x3x16xf32, #tpu.memory_space<vmem>>, vector<1x3x16xf32>
    %30 = vector.shape_cast %29 : vector<1x3x16xf32> to vector<3x16xf32>
    %31 = vector.shape_cast %28 : vector<3x16xf32> to vector<1x3x16xf32>
    tpu.vector_store %arg8[%c0_21, %c0_22, %c0_23], %31 {strides = array<i32>} : memref<1x3x16xf32, #tpu.memory_space<vmem>>, vector<1x3x16xf32>,
    return
  }
  func.func @transform_0(%arg0: i32, %arg1: i32) -> (i32, i32, i32) {
    %c0_i32 = arith.constant 0 : i32
    %c0_i32_0 = arith.constant 0 : i32
    return %arg0, %c0_i32, %arg1 : i32, i32, i32
  }
  func.func @transform_1(%arg0: i32, %arg1: i32) -> (i32, i32) {
    %c0_i32 = arith.constant 0 : i32
    %c0_i32_0 = arith.constant 0 : i32
    %c0_i32_1 = arith.constant 0 : i32
    return %c0_i32, %c0_i32_0 : i32, i32
  }
  func.func @transform_2(%arg0: i32, %arg1: i32) -> (i32, i32) {
    %c0_i32 = arith.constant 0 : i32
    %c0_i32_0 = arith.constant 0 : i32
    %c0_i32_1 = arith.constant 0 : i32
    return %c0_i32, %c0_i32_0 : i32, i32
  }
  func.func @transform_3(%arg0: i32, %arg1: i32) -> (i32, i32) {
    %c0_i32 = arith.constant 0 : i32
    %c0_i32_0 = arith.constant 0 : i32
    %c0_i32_1 = arith.constant 0 : i32
    return %c0_i32, %c0_i32_0 : i32, i32
  }
  func.func @transform_4(%arg0: i32, %arg1: i32) -> (i32, i32) {
    %c0_i32 = arith.constant 0 : i32
    %c0_i32_0 = arith.constant 0 : i32
    %c0_i32_1 = arith.constant 0 : i32
    return %c0_i32, %c0_i32_0 : i32, i32
  }
  func.func @transform_5(%arg0: i32, %arg1: i32) -> (i32, i32) {
    %c0_i32 = arith.constant 0 : i32
    %c0_i32_0 = arith.constant 0 : i32
    %c0_i32_1 = arith.constant 0 : i32
    return %c0_i32, %c0_i32_0 : i32, i32
  }
  func.func @transform_6(%arg0: i32, %arg1: i32) -> (i32, i32, i32) {
    %c0_i32 = arith.constant 0 : i32
    %c0_i32_0 = arith.constant 0 : i32
    return %arg0, %c0_i32, %arg1 : i32, i32, i32
  }
}

</mosaic_0001>

<llo_original>
// kernel: pose3d_branch.1
$region0: #{pose3d_branch.1}
  #allocation0 [shape = 'u32[]', space=smem, size = 0x4, offset = 0x4, fixed_abs, tag = 'smem constant byte address 0x4 - core index']
  #allocation1 [shape = 'u32[72,128]{1,0:T(1,128)}', space=vmem, size = 0x9000, scoped, tag = 'internal scratch']
  %s0 = inlined_call_operand.vmem [shape: f32[2,8,16], index: 0, kind: input, shape index: {}]
  %s1 = inlined_call_operand.vmem [shape: f32[32,8], index: 1, kind: input, shape index: {}]
  %s2 = inlined_call_operand.vmem [shape: f32[32,32], index: 2, kind: input, shape index: {}]
  %s3 = inlined_call_operand.vmem [shape: f32[32,32], index: 3, kind: input, shape index: {}]
  %s4 = inlined_call_operand.vmem [shape: f32[3,32], index: 4, kind: input, shape index: {}]
  %s5 = inlined_call_operand.vmem [shape: f32[32,4], index: 5, kind: input, shape index: {}]
  %s6 = inlined_call_operand.vmem [shape: f32[2,3,16], index: 6, kind: output, shape index: {}]
  %s7 = sld [smem:[#allocation0]]
  $region57: #{pose3d_branch.1} parent=0
    _
  %s9 = ssub.s32 1, %s7
  %s10 = scalar_select 0, %s9, %s7
  loop: start=0, step=1, limit=4
  $region2: #{pose3d_branch.1} parent=0 // loop_pre_header
    _
  $region3: #{pose3d_branch.1} parent=0 // loop_header
    %s12 = sphi 0, %s16
    %p13 = scmp.ge.s32.totalorder %s12, 4
    %s19 = sphi 0, %s31
    %s20 = sphi 0, %s27
    %s21 = sphi 0, %s19
    %s22 = sphi 0, %s20
    %s23 = sphi 0, %s21
    %s24 = sphi 0, %s22
    %s36 = sphi 0, %s38
    %s39 = sphi 0, %s36
    %s40 = sphi 0, %s39
    %s56 = sphi 0, %s40
    %s60 = sphi 0, %s60
    %s62 = sphi 0, %s60
    %s63 = sphi 0, %s62
    %s77 = sphi 0, %s63
    %s81 = sphi 0, %s81
    %s83 = sphi 0, %s81
    %s84 = sphi 0, %s83
    %s98 = sphi 0, %s84
    %s102 = sphi 0, %s102
    %s104 = sphi 0, %s102
    %s105 = sphi 0, %s104
    %s119 = sphi 0, %s105
    %s123 = sphi 0, %s123
    %s125 = sphi 0, %s123
    %s126 = sphi 0, %s125
    %s140 = sphi 0, %s126
    %s144 = sphi 0, %s144
    %s146 = sphi 0, %s144
    %s147 = sphi 0, %s146
    %s161 = sphi 0, %s147
    %s169 = sphi 0, %s171
    %s172 = sphi 0, %s169
    %s173 = sphi 0, %s172
    %s189 = sphi 0, %s173
  $region4: #{pose3d_branch.1} parent=0 // loop_header_branch
    %15 = sbr.rel (%p13) target = $region8
  $region5: #{pose3d_branch.1} parent=0 // loop_body
    %s17 = ssub.s32 %s12, 1
    %s18 = ssub.s32 %s12, 2
    %s25 = sadd.s32 1, %s20
    %p26 = scmp.ge.s32.totalorder %s25, 1
    %s27 = scalar_select %p26, 0, %s25
    %s28 = sadd.s32 1, %s19
    %s29 = scalar_select %p26, %s28, %s19
    %p30 = scmp.ge.s32.totalorder %s29, 2
    %s31 = scalar_select %p30, 0, %s29
    %s32 = ssub.s32 %s19, %s31
    %s33 = ssub.s32 %s20, %s27
    %s34 = sor.u32 %s32, %s33
    %p35 = scmp.eq.s32.totalorder %s34, 0
    %s37 = sadd.s32 %s36, 1
    %s38 = scalar_select %p35, %s36, %s37
    %p41 = pneg %p35
    %p42 = scmp.eq.s32.totalorder %s12, 1
    %p43 = por %p41, %p42
    %p44 = scmp.ne.s32.totalorder %s36, %s39
    %p45 = scmp.eq.s32.totalorder %s12, 0
    %p46 = por %p44, %p45
    %p47 = scmp.ne.s32.totalorder %s36, %s39
    %p48 = scmp.eq.s32.totalorder %s17, 1
    %p49 = por %p47, %p48
    %p50 = scmp.ne.s32.totalorder %s39, %s40
    %p51 = scmp.eq.s32.totalorder %s17, 0
    %p52 = por %p50, %p51
    %p53 = scmp.ne.s32.totalorder %s39, %s40
    %p54 = scmp.eq.s32.totalorder %s18, 1
    %p55 = por %p53, %p54
    %p57 = scmp.ne.s32.totalorder %s40, %s56
    %p58 = scmp.eq.s32.totalorder %s18, 0
    %p59 = por %p57, %p58
    %s61 = sadd.s32 %s60, 1
    %p64 = scmp.eq.s32.totalorder %s12, 1
    %p65 = scmp.ne.s32.totalorder %s60, %s62
    %p66 = scmp.eq.s32.totalorder %s12, 0
    %p67 = por %p65, %p66
    %p68 = scmp.ne.s32.totalorder %s60, %s62
    %p69 = scmp.eq.s32.totalorder %s17, 1
    %p70 = por %p68, %p69
    %p71 = scmp.ne.s32.totalorder %s62, %s63
    %p72 = scmp.eq.s32.totalorder %s17, 0
    %p73 = por %p71, %p72
    %p74 = scmp.ne.s32.totalorder %s62, %s63
    %p75 = scmp.eq.s32.totalorder %s18, 1
    %p76 = por %p74, %p75
    %p78 = scmp.ne.s32.totalorder %s63, %s77
    %p79 = scmp.eq.s32.totalorder %s18, 0
    %p80 = por %p78, %p79
    %s82 = sadd.s32 %s81, 1
    %p85 = scmp.eq.s32.totalorder %s12, 1
    %p86 = scmp.ne.s32.totalorder %s81, %s83
    %p87 = scmp.eq.s32.totalorder %s12, 0
    %p88 = por %p86, %p87
    %p89 = scmp.ne.s32.totalorder %s81, %s83
    %p90 = scmp.eq.s32.totalorder %s17, 1
    %p91 = por %p89, %p90
    %p92 = scmp.ne.s32.totalorder %s83, %s84
    %p93 = scmp.eq.s32.totalorder %s17, 0
    %p94 = por %p92, %p93
    %p95 = scmp.ne.s32.totalorder %s83, %s84
    %p96 = scmp.eq.s32.totalorder %s18, 1
    %p97 = por %p95, %p96
    %p99 = scmp.ne.s32.totalorder %s84, %s98
    %p100 = scmp.eq.s32.totalorder %s18, 0
    %p101 = por %p99, %p100
    %s103 = sadd.s32 %s102, 1
    %p106 = scmp.eq.s32.totalorder %s12, 1
    %p107 = scmp.ne.s32.totalorder %s102, %s104
    %p108 = scmp.eq.s32.totalorder %s12, 0
    %p109 = por %p107, %p108
    %p110 = scmp.ne.s32.totalorder %s102, %s104
    %p111 = scmp.eq.s32.totalorder %s17, 1
    %p112 = por %p110, %p111
    %p113 = scmp.ne.s32.totalorder %s104, %s105
    %p114 = scmp.eq.s32.totalorder %s17, 0
    %p115 = por %p113, %p114
    %p116 = scmp.ne.s32.totalorder %s104, %s105
    %p117 = scmp.eq.s32.totalorder %s18, 1
    %p118 = por %p116, %p117
    %p120 = scmp.ne.s32.totalorder %s105, %s119
    %p121 = scmp.eq.s32.totalorder %s18, 0
    %p122 = por %p120, %p121
    %s124 = sadd.s32 %s123, 1
    %p127 = scmp.eq.s32.totalorder %s12, 1
    %p128 = scmp.ne.s32.totalorder %s123, %s125
    %p129 = scmp.eq.s32.totalorder %s12, 0
    %p130 = por %p128, %p129
    %p131 = scmp.ne.s32.totalorder %s123, %s125
    %p132 = scmp.eq.s32.totalorder %s17, 1
    %p133 = por %p131, %p132
    %p134 = scmp.ne.s32.totalorder %s125, %s126
    %p135 = scmp.eq.s32.totalorder %s17, 0
    %p136 = por %p134, %p135
    %p137 = scmp.ne.s32.totalorder %s125, %s126
    %p138 = scmp.eq.s32.totalorder %s18, 1
    %p139 = por %p137, %p138
    %p141 = scmp.ne.s32.totalorder %s126, %s140
    %p142 = scmp.eq.s32.totalorder %s18, 0
    %p143 = por %p141, %p142
    %s145 = sadd.s32 %s144, 1
    %p148 = scmp.eq.s32.totalorder %s12, 1
    %p149 = scmp.ne.s32.totalorder %s144, %s146
    %p150 = scmp.eq.s32.totalorder %s12, 0
    %p151 = por %p149, %p150
    %p152 = scmp.ne.s32.totalorder %s144, %s146
    %p153 = scmp.eq.s32.totalorder %s17, 1
    %p154 = por %p152, %p153
    %p155 = scmp.ne.s32.totalorder %s146, %s147
    %p156 = scmp.eq.s32.totalorder %s17, 0
    %p157 = por %p155, %p156
    %p158 = scmp.ne.s32.totalorder %s146, %s147
    %p159 = scmp.eq.s32.totalorder %s18, 1
    %p160 = por %p158, %p159
    %p162 = scmp.ne.s32.totalorder %s147, %s161
    %p163 = scmp.eq.s32.totalorder %s18, 0
    %p164 = por %p162, %p163
    %s165 = ssub.s32 %s19, %s31
    %s166 = ssub.s32 %s20, %s27
    %s167 = sor.u32 %s165, %s166
    %p168 = scmp.eq.s32.totalorder %s167, 0
    %s170 = sadd.s32 %s169, 1
    %s171 = scalar_select %p168, %s169, %s170
    %p174 = pneg %p168
    %p175 = scmp.eq.s32.totalorder %s12, 1
    %p176 = por %p174, %p175
    %p177 = scmp.ne.s32.totalorder %s169, %s172
    %p178 = scmp.eq.s32.totalorder %s12, 0
    %p179 = por %p177, %p178
    %p180 = scmp.ne.s32.totalorder %s169, %s172
    %p181 = scmp.eq.s32.totalorder %s17, 1
    %p182 = por %p180, %p181
    %p183 = scmp.ne.s32.totalorder %s172, %s173
    %p184 = scmp.eq.s32.totalorder %s17, 0
    %p185 = por %p183, %p184
    %p186 = scmp.ne.s32.totalorder %s172, %s173
    %p187 = scmp.eq.s32.totalorder %s18, 1
    %p188 = por %p186, %p187
    %p190 = scmp.ne.s32.totalorder %s173, %s189
    %p191 = scmp.eq.s32.totalorder %s18, 0
    %p192 = por %p190, %p191
    %p193 = scmp.le.s32.totalorder 1, %s12
    %p194 = scmp.lt.s32.totalorder %s12, 3
    %p195 = pnand %p193, %p194
    %p196 = pneg %p195
    // Predicated region
    $region9: #{pose3d_branch.1} parent=5 // pred_check
      _
    $region10: #{pose3d_branch.1} parent=5 // pred_check_branch
      %198 = sbr.rel (%p195) target = $region12
    $region11: #{pose3d_branch.1} parent=5 // pred_region
      %s199 = ssub.s32 %s12, 1
      // Predicated region
      $region13: #{pose3d_branch.1} parent=11 // pred_check
        %p200 = pneg %p73
      $region14: #{pose3d_branch.1} parent=11 // pred_check_branch
        %202 = sbr.rel (%p200) target = $region16
      $region15: #{pose3d_branch.1} parent=11 // pred_region
        _
      $region16: #{pose3d_branch.1} parent=11 // pred_fallthru
        _
      // Predicated region
      $region17: #{pose3d_branch.1} parent=11 // pred_check
        %p203 = pneg %p94
      $region18: #{pose3d_branch.1} parent=11 // pred_check_branch
        %205 = sbr.rel (%p203) target = $region20
      $region19: #{pose3d_branch.1} parent=11 // pred_region
        _
      $region20: #{pose3d_branch.1} parent=11 // pred_fallthru
        _
      // Predicated region
      $region21: #{pose3d_branch.1} parent=11 // pred_check
        %p206 = pneg %p115
      $region22: #{pose3d_branch.1} parent=11 // pred_check_branch
        %208 = sbr.rel (%p206) target = $region24
      $region23: #{pose3d_branch.1} parent=11 // pred_region
        _
      $region24: #{pose3d_branch.1} parent=11 // pred_fallthru
        _
      // Predicated region
      $region25: #{pose3d_branch.1} parent=11 // pred_check
        %p209 = pneg %p136
      $region26: #{pose3d_branch.1} parent=11 // pred_check_branch
        %211 = sbr.rel (%p209) target = $region28
      $region27: #{pose3d_branch.1} parent=11 // pred_region
        _
      $region28: #{pose3d_branch.1} parent=11 // pred_fallthru
        _
      // Predicated region
      $region29: #{pose3d_branch.1} parent=11 // pred_check
        %p212 = pneg %p157
      $region30: #{pose3d_branch.1} parent=11 // pred_check_branch
        %214 = sbr.rel (%p212) target = $region32
      $region31: #{pose3d_branch.1} parent=11 // pred_region
        _
      $region32: #{pose3d_branch.1} parent=11 // pred_fallthru
        _
    $region12: #{pose3d_branch.1} parent=5 // pred_fallthru
      _
    %p215 = scmp.lt.s32.totalorder %s12, 2
    // Predicated region
    $region33: #{pose3d_branch.1} parent=5 // pred_check
      %p216 = pneg %p215
    $region34: #{pose3d_branch.1} parent=5 // pred_check_branch
      %218 = sbr.rel (%p216) target = $region36
    $region35: #{pose3d_branch.1} parent=5 // pred_region
      // Predicated region
      $region37: #{pose3d_branch.1} parent=35 // pred_check
        %p219 = pneg %p46
      $region38: #{pose3d_branch.1} parent=35 // pred_check_branch
        %221 = sbr.rel (%p219) target = $region40
      $region39: #{pose3d_branch.1} parent=35 // pred_region
        %p222 = scmp.lt.s32.totalorder %s19, 1
        %s223 = scalar_select %p222, %s19, 1
        %p224 = scmp.lt.s32.totalorder %s20, 0
        %s225 = scalar_select %p224, %s20, 0
        %s226 = sadd.s32 %s225, %s223
        %s227 = smul.addr %s226, 8
        %s228 = scalar_lea.vmem %s0, %s227
      $region40: #{pose3d_branch.1} parent=35 // pred_fallthru
        _
    $region36: #{pose3d_branch.1} parent=5 // pred_fallthru
      _
    %p229 = scmp.le.s32.totalorder 1, %s12
    %p230 = scmp.lt.s32.totalorder %s12, 3
    %p231 = pnand %p229, %p230
    %p232 = pneg %p231
    // Predicated region
    $region41: #{pose3d_branch.1} parent=5 // pred_check
      _
    $region42: #{pose3d_branch.1} parent=5 // pred_check_branch
      %234 = sbr.rel (%p231) target = $region44
    $region43: #{pose3d_branch.1} parent=5 // pred_region
      %s235 = ssub.s32 %s12, 1
      %p236 = scmp.lt.s32.totalorder %s21, 1
      %s237 = scalar_select %p236, %s21, 1
      %p238 = scmp.lt.s32.totalorder %s22, 0
      %s239 = scalar_select %p238, %s22, 0
      %s240 = sadd.s32 %s239, %s237
      %s241 = smul.addr %s240, 8
      %s242 = scalar_lea.vmem %s0, %s241
      %p243 = pneg %p52
      %p244 = pneg %p49
      %p245 = pneg %p73
      %p246 = pneg %p70
      %p247 = pneg %p94
      %p248 = pneg %p91
      %p249 = pneg %p115
      %p250 = pneg %p112
      %p251 = pneg %p136
      %p252 = pneg %p133
      %p253 = pneg %p157
      %p254 = pneg %p154
      %p255 = pneg %p185
      %p256 = pneg %p182
      %p257 = scmp.lt.s32.totalorder %s21, 1
      %s258 = scalar_select %p257, %s21, 1
      %p259 = scmp.lt.s32.totalorder %s22, 0
      %s260 = scalar_select %p259, %s22, 0
      %s261 = sadd.s32 %s260, %s258
      %s262 = smul.addr %s261, 4
      %s263 = scalar_lea.vmem %s6, %s262
      %p264 = scmp.lt.s32.totalorder %s21, 1
      %s265 = scalar_select %p264, %s21, 1
      %p266 = scmp.lt.s32.totalorder %s22, 0
      %s267 = scalar_select %p266, %s22, 0
      %s268 = sadd.s32 %s267, %s265
      %s269 = smul.addr %s268, 8
      %s270 = scalar_lea.vmem %s0, %s269
      %p271 = scmp.lt.s32.totalorder %s21, 1
      %s272 = scalar_select %p271, %s21, 1
      %p273 = scmp.lt.s32.totalorder %s22, 0
      %s274 = scalar_select %p273, %s22, 0
      %s275 = sadd.s32 %s274, %s272
      %s276 = smul.addr %s275, 4
      %s277 = scalar_lea.vmem %s6, %s276
      %v278 = vld [vmem:[%s5] sm:$0xff]
      %v279 = vld [vmem:[%s5 + $0x8] sm:$0xff]
      %v280 = vld [vmem:[%s5 + $0x10] sm:$0xff]
      %v281 = vld [vmem:[%s5 + $0x18] sm:$0xff]
      %v282 = vld [vmem:[%s5] sm:$0x7]
      %v283 = vld [vmem:[%s270] sm:$0xff]
      %v284 = vld [vmem:[%s1] sm:$0xff]
      %v285 = vld [vmem:[%s1 + $0x8] sm:$0xff]
      %v286 = vld [vmem:[%s1 + $0x10] sm:$0xff]
      %v287 = vld [vmem:[%s1 + $0x18] sm:$0xff]
      %289 = vset.pattern.permute.xlu0 0
      %290 = vperm.xlu0 %289, %v278
      %v291 = vpop.permute.xlu0 %290
      %294 = vset.pattern.permute.xlu0 0
      %295 = vperm.xlu0 %294, %v279
      %v296 = vpop.permute.xlu0 %295
      %299 = vset.pattern.permute.xlu0 0
      %300 = vperm.xlu0 %299, %v280
      %v301 = vpop.permute.xlu0 %300
      %304 = vset.pattern.permute.xlu0 0
      %305 = vperm.xlu0 %304, %v281
      %v306 = vpop.permute.xlu0 %305
      %vm308 = vcmask 64512
      %v310 = vsel %vm308, %v284, 0
      %v313 = vsel %vm308, %v285, 0
      %v316 = vsel %vm308, %v286, 0
      %v319 = vsel %vm308, %v287, 0
      %321 = vmatpush.msra.mxu0 0.0
      %322 = vmatpush.msra.mxu0 0.0
      %323 = vmatpush.msra.mxu0 0.0
      %324 = vmatpush.msra.mxu0 0.0
      %325 = vmatpush.msra.mxu0 0.0
      %326 = vmatpush.msra.mxu0 0.0
      %327 = vmatpush.msra.mxu0 0.0
      %328 = vmatpush.msra.mxu0 0.0
      %329 = vmatpush.msra.mxu0 0.0
      %330 = vmatpush.msra.mxu0 0.0
      %331 = vmatpush.msra.mxu0 0.0
      %332 = vmatpush.msra.mxu0 0.0
      %333 = vmatpush.msra.mxu0 0.0
      %334 = vmatpush.msra.mxu0 0.0
      %335 = vmatpush.msra.mxu0 0.0
      %336 = vmatpush.msra.mxu0 %v283
      %337 = vmatmul.f32.gmra.mxu0 %v310
      %v338 = vpop.f32.mrf.mxu0
      %v339 = vadd.f32 %v291, %v338
      %340 = vmatmul.f32.gmra.mxu0 %v313
      %v341 = vpop.f32.mrf.mxu0
      %v342 = vadd.f32 %v296, %v341
      %343 = vmatmul.f32.gmra.mxu0 %v316
      %v344 = vpop.f32.mrf.mxu0
      %v345 = vadd.f32 %v301, %v344
      %346 = vmatmul.f32.gmra.mxu0 %v319
      %v347 = vpop.f32.mrf.mxu0
      %v348 = vadd.f32 %v306, %v347
      %349 = vdwg.mxu0
      %v350 = vmax.f32 %v339, 0.0
      %v351 = vmax.f32 %v342, 0.0
      %v352 = vmax.f32 %v345, 0.0
      %v353 = vmax.f32 %v348, 0.0
      %v354 = vld [vmem:[%s2] sm:$0xff]
      %v355 = vld [vmem:[%s2 + $0x8] sm:$0xff]
      %v356 = vld [vmem:[%s2 + $0x10] sm:$0xff]
      %v357 = vld [vmem:[%s2 + $0x18] sm:$0xff]
      %358 = vset.pattern.permute.xlu0 1
      %359 = vperm.xlu0 %358, %v278
      %v360 = vpop.permute.xlu0 %359
      %362 = vset.pattern.permute.xlu0 1
      %363 = vperm.xlu0 %362, %v279
      %v364 = vpop.permute.xlu0 %363
      %366 = vset.pattern.permute.xlu0 1
      %367 = vperm.xlu0 %366, %v280
      %v368 = vpop.permute.xlu0 %367
      %370 = vset.pattern.permute.xlu0 1
      %371 = vperm.xlu0 %370, %v281
      %v372 = vpop.permute.xlu0 %371
      %vm374 = vcmask 261120
      %v376 = vsel %vm374, %v354, 0
      %v379 = vsel %vm374, %v355, 0
      %v382 = vsel %vm374, %v356, 0
      %v385 = vsel %vm374, %v357, 0
      %387 = vmatpush.msra.mxu0 0.0
      %388 = vmatpush.msra.mxu0 0.0
      %389 = vmatpush.msra.mxu0 0.0
      %390 = vmatpush.msra.mxu0 0.0
      %391 = vmatpush.msra.mxu0 0.0
      %392 = vmatpush.msra.mxu0 0.0
      %393 = vmatpush.msra.mxu0 0.0
      %394 = vmatpush.msra.mxu0 0.0
      %395 = vmatpush.msra.mxu0 0.0
      %396 = vmatpush.msra.mxu0 0.0
      %397 = vmatpush.msra.mxu0 0.0
      %398 = vmatpush.msra.mxu0 0.0
      %399 = vmatpush.msra.mxu0 %v353
      %400 = vmatpush.msra.mxu0 %v352
      %401 = vmatpush.msra.mxu0 %v351
      %402 = vmatpush.msra.mxu0 %v350
      %403 = vmatmul.f32.gmra.mxu0 %v376
      %v404 = vpop.f32.mrf.mxu0
      %v405 = vadd.f32 %v360, %v404
      %406 = vmatmul.f32.gmra.mxu0 %v379
      %v407 = vpop.f32.mrf.mxu0
      %v408 = vadd.f32 %v364, %v407
      %409 = vmatmul.f32.gmra.mxu0 %v382
      %v410 = vpop.f32.mrf.mxu0
      %v411 = vadd.f32 %v368, %v410
      %412 = vmatmul.f32.gmra.mxu0 %v385
      %v413 = vpop.f32.mrf.mxu0
      %v414 = vadd.f32 %v372, %v413
      %415 = vdwg.mxu0
      %v416 = vmax.f32 %v405, 0.0
      %v417 = vmax.f32 %v408, 0.0
      %v418 = vmax.f32 %v411, 0.0
      %v419 = vmax.f32 %v414, 0.0
      %v420 = vld [vmem:[%s3] sm:$0xff]
      %v421 = vld [vmem:[%s3 + $0x8] sm:$0xff]
      %v422 = vld [vmem:[%s3 + $0x10] sm:$0xff]
      %v423 = vld [vmem:[%s3 + $0x18] sm:$0xff]
      %424 = vset.pattern.permute.xlu0 2
      %425 = vperm.xlu0 %424, %v278
      %v426 = vpop.permute.xlu0 %425
      %428 = vset.pattern.permute.xlu0 2
      %429 = vperm.xlu0 %428, %v279
      %v430 = vpop.permute.xlu0 %429
      %432 = vset.pattern.permute.xlu0 2
      %433 = vperm.xlu0 %432, %v280
      %v434 = vpop.permute.xlu0 %433
      %436 = vset.pattern.permute.xlu0 2
      %437 = vperm.xlu0 %436, %v281
      %v438 = vpop.permute.xlu0 %437
      %v441 = vsel %vm374, %v420, 0
      %v444 = vsel %vm374, %v421, 0
      %v447 = vsel %vm374, %v422, 0
      %v450 = vsel %vm374, %v423, 0
      %452 = vmatpush.msra.mxu0 0.0
      %453 = vmatpush.msra.mxu0 0.0
      %454 = vmatpush.msra.mxu0 0.0
      %455 = vmatpush.msra.mxu0 0.0
      %456 = vmatpush.msra.mxu0 0.0
      %457 = vmatpush.msra.mxu0 0.0
      %458 = vmatpush.msra.mxu0 0.0
      %459 = vmatpush.msra.mxu0 0.0
      %460 = vmatpush.msra.mxu0 0.0
      %461 = vmatpush.msra.mxu0 0.0
      %462 = vmatpush.msra.mxu0 0.0
      %463 = vmatpush.msra.mxu0 0.0
      %464 = vmatpush.msra.mxu0 %v419
      %465 = vmatpush.msra.mxu0 %v418
      %466 = vmatpush.msra.mxu0 %v417
      %467 = vmatpush.msra.mxu0 %v416
      %468 = vmatmul.f32.gmra.mxu0 %v441
      %v469 = vpop.f32.mrf.mxu0
      %v470 = vadd.f32 %v426, %v469
      %471 = vmatmul.f32.gmra.mxu0 %v444
      %v472 = vpop.f32.mrf.mxu0
      %v473 = vadd.f32 %v430, %v472
      %474 = vmatmul.f32.gmra.mxu0 %v447
      %v475 = vpop.f32.mrf.mxu0
      %v476 = vadd.f32 %v434, %v475
      %477 = vmatmul.f32.gmra.mxu0 %v450
      %v478 = vpop.f32.mrf.mxu0
      %v479 = vadd.f32 %v438, %v478
      %480 = vdwg.mxu0
      %v481 = vmax.f32 %v470, 0.0
      %v482 = vmax.f32 %v473, 0.0
      %v483 = vmax.f32 %v476, 0.0
      %v484 = vmax.f32 %v479, 0.0
      %v485 = vadd.f32 %v350, %v481
      %v486 = vadd.f32 %v351, %v482
      %v487 = vadd.f32 %v352, %v483
      %v488 = vadd.f32 %v353, %v484
      %v489 = vld [vmem:[%s4] sm:$0x7]
      %491 = vset.pattern.permute.xlu0 3
      %492 = vperm.xlu0 %491, %v282
      %v493 = vpop.permute.xlu0 %492
      %v496 = vsel %vm374, %v489, 0
      %498 = vmatpush.msra.mxu0 0.0
      %499 = vmatpush.msra.mxu0 0.0
      %500 = vmatpush.msra.mxu0 0.0
      %501 = vmatpush.msra.mxu0 0.0
      %502 = vmatpush.msra.mxu0 0.0
      %503 = vmatpush.msra.mxu0 0.0
      %504 = vmatpush.msra.mxu0 0.0
      %505 = vmatpush.msra.mxu0 0.0
      %506 = vmatpush.msra.mxu0 0.0
      %507 = vmatpush.msra.mxu0 0.0
      %508 = vmatpush.msra.mxu0 0.0
      %509 = vmatpush.msra.mxu0 0.0
      %510 = vmatpush.msra.mxu0 %v488
      %511 = vmatpush.msra.mxu0 %v487
      %512 = vmatpush.msra.mxu0 %v486
      %513 = vmatpush.msra.mxu0 %v485
      %514 = vmatmul.f32.gmra.mxu0 %v496
      %v515 = vpop.f32.mrf.mxu0
      %v516 = vadd.f32 %v493, %v515
      %517 = vdwg.mxu0
      %vm518 = vcmask 124928
      %519 = vst.msk [vmem:[%s277] sm:$0x7] %vm518, %v516
      %p520 = scmp.lt.s32.totalorder %s21, 1
      %s521 = scalar_select %p520, %s21, 1
      %p522 = scmp.lt.s32.totalorder %s22, 0
      %s523 = scalar_select %p522, %s22, 0
      %s524 = sadd.s32 %s523, %s521
      %s525 = smul.addr %s524, 4
      %s526 = scalar_lea.vmem %s6, %s525
      // Predicated region
      $region45: #{pose3d_branch.1} parent=43 // pred_check
        %p527 = pneg %p182
      $region46: #{pose3d_branch.1} parent=43 // pred_check_branch
        %529 = sbr.rel (%p527) target = $region48
      $region47: #{pose3d_branch.1} parent=43 // pred_region
        _
      $region48: #{pose3d_branch.1} parent=43 // pred_fallthru
        _
    $region44: #{pose3d_branch.1} parent=5 // pred_fallthru
      _
    %p530 = scmp.le.s32.totalorder 2, %s12
    // Predicated region
    $region49: #{pose3d_branch.1} parent=5 // pred_check
      %p531 = pneg %p530
    $region50: #{pose3d_branch.1} parent=5 // pred_check_branch
      %533 = sbr.rel (%p531) target = $region52
    $region51: #{pose3d_branch.1} parent=5 // pred_region
      %s534 = ssub.s32 %s12, 2
      // Predicated region
      $region53: #{pose3d_branch.1} parent=51 // pred_check
        %p535 = pneg %p188
      $region54: #{pose3d_branch.1} parent=51 // pred_check_branch
        %537 = sbr.rel (%p535) target = $region56
      $region55: #{pose3d_branch.1} parent=51 // pred_region
        %p538 = scmp.lt.s32.totalorder %s23, 1
        %s539 = scalar_select %p538, %s23, 1
        %p540 = scmp.lt.s32.totalorder %s24, 0
        %s541 = scalar_select %p540, %s24, 0
        %s542 = sadd.s32 %s541, %s539
        %s543 = smul.addr %s542, 4
        %s544 = scalar_lea.vmem %s6, %s543
      $region56: #{pose3d_branch.1} parent=51 // pred_fallthru
        _
    $region52: #{pose3d_branch.1} parent=5 // pred_fallthru
      _
  $region6: #{pose3d_branch.1} parent=0 // loop_footer
    %s16 = sadd.s32 1, %s12
  $region7: #{pose3d_branch.1} parent=0 // loop_footer_branch
    %11 = sbr.rel target = $region3
  $region8: #{pose3d_branch.1} parent=0 // loop_exit
    _

</llo_original>
